<compile_context>
chip_gen: v7x
topology: tpu7x:2x2x1
jax: 0.10.0
libtpu: 0.0.40
codegen_flags: <defaults>
</compile_context>

<pallas_src>
import functools

import jax
import jax.numpy as jnp
from jax import lax
from jax.experimental import pallas as pl
from jax.experimental.pallas import tpu as pltpu


def splicebert_output_kernel(h_ref, res_ref, w_ref, b_ref, g_ref, beta_ref,
                             o_ref, *, eps, hidden):
    # Cast activations to bf16 in-kernel (MXU-native operand); accumulate f32.
    h = h_ref[...].astype(jnp.bfloat16)
    x = jnp.dot(h, w_ref[...], preferred_element_type=jnp.float32)

    # fused bias + residual add (dropout = identity), all in f32
    x = x + b_ref[...] + res_ref[...].astype(jnp.float32)

    # LayerNorm over the hidden (lane) axis — centered two-pass variance.
    inv_h = 1.0 / float(hidden)
    mean = jnp.sum(x, axis=-1, keepdims=True) * inv_h
    xc = x - mean
    var = jnp.sum(xc * xc, axis=-1, keepdims=True) * inv_h
    inv = lax.rsqrt(var + eps)           # EUP slot

    y = xc * inv * g_ref[...] + beta_ref[...]
    o_ref[...] = y.astype(o_ref.dtype)


def _pick_block_m(rows, tm):
    """Largest row tile <= tm that divides rows; prefer >= 2 tiles (v7x megacore)."""
    if rows <= 8:
        return rows
    cands = [c for c in (1024, 512, 256, 128, 64, 32, 16, 8) if c <= max(tm, 8)]
    for c in cands:                       # no tail AND at least 2 grid tiles
        if rows % c == 0 and rows // c >= 2:
            return c
    for c in cands:                       # no tail, single tile
        if rows % c == 0:
            return c
    # Ragged fallback: Pallas masks the final block's out-of-range stores;
    # garbage tail rows stay finite through rsqrt(var + eps).
    return min(tm, ((rows + 7) // 8) * 8)


def splicebert_output(hidden_states, input_tensor, weight_t, bias, gamma, beta,
                      *, eps=1e-12, tm=512, out_dtype=None):
    """hidden_states: [B, S, intermediate]; input_tensor: [B, S, hidden].
    weight_t: [intermediate, hidden] — pre-transposed (and ideally pre-cast to
    bf16 at model init) version of the PyTorch Linear weight."""
    B, S, inter = hidden_states.shape
    hidden = input_tensor.shape[-1]
    rows = B * S
    if out_dtype is None:
        out_dtype = hidden_states.dtype   # pass jnp.bfloat16 if downstream accepts it

    # Big streams stay in their native dtype (no extra HBM pass in the wrapper).
    h2d = hidden_states.reshape(rows, inter)
    r2d = input_tensor.reshape(rows, hidden)
    # Weight should already be bf16 (init-time); cast only if it is not.
    w2d = weight_t if weight_t.dtype == jnp.bfloat16 else weight_t.astype(jnp.bfloat16)
    b2d = bias.reshape(1, hidden).astype(jnp.float32)
    g2d = gamma.reshape(1, hidden).astype(jnp.float32)
    beta2d = beta.reshape(1, hidden).astype(jnp.float32)

    block_m = _pick_block_m(rows, tm)
    grid_m = pl.cdiv(rows, block_m)

    # VMEM working set: double-buffered row-tiled streams + single-buffered
    # resident weight/params; clamp so it also fits a v7x TC (64 MiB).
    isz = lambda dt: jnp.dtype(dt).itemsize
    work_bytes = (2 * block_m * inter * isz(h2d.dtype)
                  + 2 * block_m * hidden * isz(r2d.dtype)
                  + 2 * block_m * hidden * isz(out_dtype)
                  + inter * hidden * 2            # bf16 weight, single buffer
                  + 3 * hidden * 4)
    vmem_limit = int(min(max(work_bytes * 3 // 2 + (2 << 20), 32 << 20), 64 << 20))

    cost = pl.CostEstimate(
        flops=2 * rows * inter * hidden,
        transcendentals=rows,                      # one rsqrt per row
        bytes_accessed=(rows * inter * isz(h2d.dtype)
                        + rows * hidden * isz(r2d.dtype)
                        + rows * hidden * isz(out_dtype)
                        + inter * hidden * 2 + 3 * hidden * 4),
    )

    kernel = functools.partial(splicebert_output_kernel, eps=eps, hidden=hidden)

    out2d = pl.pallas_call(
        kernel,
        out_shape=jax.ShapeDtypeStruct((rows, hidden), out_dtype),
        grid=(grid_m,),
        in_specs=[
            # row-tiled streams (default double-buffered pipeline)
            pl.BlockSpec((block_m, inter), lambda i: (i, 0)),
            pl.BlockSpec((block_m, hidden), lambda i: (i, 0)),
            # grid-invariant operands: resident, single-buffered
            pl.BlockSpec((inter, hidden), lambda i: (0, 0),
                         pipeline_mode=pl.Buffered(1)),
            pl.BlockSpec((1, hidden), lambda i: (0, 0),
                         pipeline_mode=pl.Buffered(1)),
            pl.BlockSpec((1, hidden), lambda i: (0, 0),
                         pipeline_mode=pl.Buffered(1)),
            pl.BlockSpec((1, hidden), lambda i: (0, 0),
                         pipeline_mode=pl.Buffered(1)),
        ],
        out_specs=pl.BlockSpec((block_m, hidden), lambda i: (i, 0)),
        compiler_params=pltpu.CompilerParams(
            dimension_semantics=("parallel",),
            vmem_limit_bytes=vmem_limit,
        ),
        cost_estimate=cost,
    )(h2d, r2d, w2d, b2d, g2d, beta2d)

    return out2d.reshape(B, S, hidden)


def reference(hidden_states, input_tensor, weight_t, bias, gamma, beta,
              eps=1e-12):
    x = jnp.einsum("bsi,ih->bsh", hidden_states.astype(jnp.float32),
                   weight_t.astype(jnp.float32)) + bias
    x = x + input_tensor.astype(jnp.float32)
    mean = jnp.mean(x, axis=-1, keepdims=True)
    var = jnp.mean((x - mean) ** 2, axis=-1, keepdims=True)
    y = (x - mean) * lax.rsqrt(var + eps)
    return (y * gamma + beta).astype(hidden_states.dtype)


if __name__ == "__main__":
    # Small-but-lane-dense config: batch=2, seq=256, hidden=128, intermediate=256
    # (rows = 512 -> two 256-row grid tiles; hidden multiple of 128 keeps the
    # output stores unmasked).
    B, S, HIDDEN, INTER = 2, 256, 128, 256
    EPS = 1e-12

    key = jax.random.PRNGKey(0)
    k1, k2, k3, k4 = jax.random.split(key, 4)

    hidden_states = jax.random.normal(k1, (B, S, INTER), dtype=jnp.float32)
    input_tensor = jax.random.normal(k2, (B, S, HIDDEN), dtype=jnp.float32)

    # nn.Linear(intermediate_size, hidden_size): weight [hidden, inter], bias [hidden]
    w = jax.random.normal(k3, (HIDDEN, INTER), dtype=jnp.float32) * 0.02
    b = jax.random.normal(k4, (HIDDEN,), dtype=jnp.float32) * 0.02
    # Init-time (one-off) transpose + bf16 cast of the parameter, not per-call.
    weight_t_bf16 = jnp.asarray(w.T, dtype=jnp.bfloat16)   # [inter, hidden]

    # nn.LayerNorm(hidden_size): gamma=1, beta=0
    gamma = jnp.ones((HIDDEN,), dtype=jnp.float32)
    beta = jnp.zeros((HIDDEN,), dtype=jnp.float32)

    out = splicebert_output(hidden_states, input_tensor, weight_t_bf16, b,
                            gamma, beta, eps=EPS)
    out = jax.block_until_ready(out)

    ref = reference(hidden_states, input_tensor, w.T, b, gamma, beta, EPS)
    assert out.shape == (B, S, HIDDEN)
    # tolerance covers bf16 MXU operands (accumulation + LayerNorm are f32)
    assert jnp.allclose(out, ref, atol=2e-2, rtol=2e-2), "mismatch vs reference"

    print("KERNEL_OK")
</pallas_src>

<mosaic_0001>
module attributes {stable_mosaic.version = 11 : i64} {
  func.func @splicebert_output_kernel(%arg0: i32, %arg1: memref<256x256xf32, #tpu.memory_space<vmem>>, %arg2: memref<256x128xf32, #tpu.memory_space<vmem>>, %arg3: memref<256x128xbf16, #tpu.memory_space<vmem>>, %arg4: memref<1x128xf32, #tpu.memory_space<vmem>>, %arg5: memref<1x128xf32, #tpu.memory_space<vmem>>, %arg6: memref<1x128xf32, #tpu.memory_space<vmem>>, %arg7: memref<256x128xf32, #tpu.memory_space<vmem>>) attributes {dimension_semantics = [#tpu.dimension_semantics<parallel>], iteration_bounds = array<i64: 2>, scalar_prefetch = 0 : i64, scratch_operands = 0 : i64, tpu.core_type = #tpu.core_type<tc>, window_params = [{transform_indices = @transform_0, window_bounds = array<i64: 256, 256>}, {transform_indices = @transform_1, window_bounds = array<i64: 256, 128>}, {pipeline_mode = #tpu.pipeline_mode<synchronous>, transform_indices = @transform_2, window_bounds = array<i64: 256, 128>}, {pipeline_mode = #tpu.pipeline_mode<synchronous>, transform_indices = @transform_3, window_bounds = array<i64: 1, 128>}, {pipeline_mode = #tpu.pipeline_mode<synchronous>, transform_indices = @transform_4, window_bounds = array<i64: 1, 128>}, {pipeline_mode = #tpu.pipeline_mode<synchronous>, transform_indices = @transform_5, window_bounds = array<i64: 1, 128>}, {transform_indices = @transform_6, window_bounds = array<i64: 256, 128>}]} {
    %c0 = arith.constant 0 : index
    %c0_0 = arith.constant 0 : index
    %0 = vector.load %arg1[%c0, %c0_0] : memref<256x256xf32, #tpu.memory_space<vmem>>, vector<256x256xf32>
    %1 = arith.truncf %0 : vector<256x256xf32> to vector<256x256xbf16>
    %c0_1 = arith.constant 0 : index
    %c0_2 = arith.constant 0 : index
    %2 = vector.load %arg3[%c0_1, %c0_2] : memref<256x128xbf16, #tpu.memory_space<vmem>>, vector<256x128xbf16>
    %cst = arith.constant dense<0.000000e+00> : vector<256x128xf32>
    %3 = tpu.matmul %1, %2, %cst {dimension_numbers = #tpu.dot_dimension_numbers<[1], [0], [0], [1], [0, 0, 1, 1], [], []>} : vector<256x256xbf16>, vector<256x128xbf16>, vector<256x128xf32> -> vector<256x128xf32>
    %c0_3 = arith.constant 0 : index
    %c0_4 = arith.constant 0 : index
    %4 = vector.load %arg4[%c0_3, %c0_4] : memref<1x128xf32, #tpu.memory_space<vmem>>, vector<1x128xf32>
    %5 = vector.broadcast %4 : vector<1x128xf32> to vector<256x128xf32>
    %6 = arith.addf %3, %5 : vector<256x128xf32>
    %c0_5 = arith.constant 0 : index
    %c0_6 = arith.constant 0 : index
    %7 = vector.load %arg2[%c0_5, %c0_6] : memref<256x128xf32, #tpu.memory_space<vmem>>, vector<256x128xf32>
    %8 = arith.addf %6, %7 : vector<256x128xf32>
    %cst_7 = arith.constant dense<0.000000e+00> : vector<256xf32>
    %9 = vector.multi_reduction <add>, %8, %cst_7 [1] : vector<256x128xf32> to vector<256xf32>
    %10 = vector.shape_cast %9 : vector<256xf32> to vector<256x1xf32>
    %cst_8 = arith.constant 7.812500e-03 : f32
    %11 = vector.broadcast %cst_8 : f32 to vector<256x1xf32>
    %12 = arith.mulf %10, %11 : vector<256x1xf32>
    %13 = vector.broadcast %12 : vector<256x1xf32> to vector<256x128xf32>
    %14 = arith.subf %8, %13 : vector<256x128xf32>
    %15 = arith.mulf %14, %14 : vector<256x128xf32>
    %cst_9 = arith.constant dense<0.000000e+00> : vector<256xf32>
    %16 = vector.multi_reduction <add>, %15, %cst_9 [1] : vector<256x128xf32> to vector<256xf32>
    %17 = vector.shape_cast %16 : vector<256xf32> to vector<256x1xf32>
    %cst_10 = arith.constant 7.812500e-03 : f32
    %18 = vector.broadcast %cst_10 : f32 to vector<256x1xf32>
    %19 = arith.mulf %17, %18 : vector<256x1xf32>
    %cst_11 = arith.constant 9.99999996E-13 : f32
    %20 = vector.broadcast %cst_11 : f32 to vector<256x1xf32>
    %21 = arith.addf %19, %20 : vector<256x1xf32>
    %22 = math.rsqrt %21 : vector<256x1xf32>
    %23 = vector.broadcast %22 : vector<256x1xf32> to vector<256x128xf32>
    %24 = arith.mulf %14, %23 : vector<256x128xf32>
    %c0_12 = arith.constant 0 : index
    %c0_13 = arith.constant 0 : index
    %25 = vector.load %arg5[%c0_12, %c0_13] : memref<1x128xf32, #tpu.memory_space<vmem>>, vector<1x128xf32>
    %26 = vector.broadcast %25 : vector<1x128xf32> to vector<256x128xf32>
    %27 = arith.mulf %24, %26 : vector<256x128xf32>
    %c0_14 = arith.constant 0 : index
    %c0_15 = arith.constant 0 : index
    %28 = vector.load %arg6[%c0_14, %c0_15] : memref<1x128xf32, #tpu.memory_space<vmem>>, vector<1x128xf32>
    %29 = vector.broadcast %28 : vector<1x128xf32> to vector<256x128xf32>
    %30 = arith.addf %27, %29 : vector<256x128xf32>
    %c0_16 = arith.constant 0 : index
    %c0_17 = arith.constant 0 : index
    %31 = vector.load %arg7[%c0_16, %c0_17] : memref<256x128xf32, #tpu.memory_space<vmem>>, vector<256x128xf32>
    tpu.vector_store %arg7[%c0_16, %c0_17], %30 {strides = array<i32>} : memref<256x128xf32, #tpu.memory_space<vmem>>, vector<256x128xf32>,
    return
  }
  func.func @transform_0(%arg0: i32) -> (i32, i32) {
    %c0_i32 = arith.constant 0 : i32
    %c0_i32_0 = arith.constant 0 : i32
    return %arg0, %c0_i32 : i32, i32
  }
  func.func @transform_1(%arg0: i32) -> (i32, i32) {
    %c0_i32 = arith.constant 0 : i32
    %c0_i32_0 = arith.constant 0 : i32
    return %arg0, %c0_i32 : i32, i32
  }
  func.func @transform_2(%arg0: i32) -> (i32, i32) {
    %c0_i32 = arith.constant 0 : i32
    %c0_i32_0 = arith.constant 0 : i32
    %c0_i32_1 = arith.constant 0 : i32
    return %c0_i32, %c0_i32_0 : i32, i32
  }
  func.func @transform_3(%arg0: i32) -> (i32, i32) {
    %c0_i32 = arith.constant 0 : i32
    %c0_i32_0 = arith.constant 0 : i32
    %c0_i32_1 = arith.constant 0 : i32
    return %c0_i32, %c0_i32_0 : i32, i32
  }
  func.func @transform_4(%arg0: i32) -> (i32, i32) {
    %c0_i32 = arith.constant 0 : i32
    %c0_i32_0 = arith.constant 0 : i32
    %c0_i32_1 = arith.constant 0 : i32
    return %c0_i32, %c0_i32_0 : i32, i32
  }
  func.func @transform_5(%arg0: i32) -> (i32, i32) {
    %c0_i32 = arith.constant 0 : i32
    %c0_i32_0 = arith.constant 0 : i32
    %c0_i32_1 = arith.constant 0 : i32
    return %c0_i32, %c0_i32_0 : i32, i32
  }
  func.func @transform_6(%arg0: i32) -> (i32, i32) {
    %c0_i32 = arith.constant 0 : i32
    %c0_i32_0 = arith.constant 0 : i32
    return %arg0, %c0_i32 : i32, i32
  }
}

</mosaic_0001>

<llo_original>
// kernel: tpu_custom_call.1
$region0: #{tpu_custom_call.1}
  #allocation0 [shape = 'u32[]', space=smem, size = 0x4, offset = 0x4, fixed_abs, tag = 'smem constant byte address 0x4 - core index']
  #allocation1 [shape = 'u32[144,128]{1,0:T(1,128)}', space=vmem, size = 0x12000, scoped, tag = 'internal scratch']
  %s0 = inlined_call_operand.hbm [shape: f32[512,256], index: 0, kind: input, shape index: {}]
  %s1 = inlined_call_operand.hbm [shape: f32[512,128], index: 1, kind: input, shape index: {}]
  %s2 = inlined_call_operand.hbm [shape: bf16[256,128], index: 2, kind: input, shape index: {}]
  %s3 = inlined_call_operand.vmem [shape: f32[1,128], index: 3, kind: input, shape index: {}]
  %s4 = inlined_call_operand.vmem [shape: f32[1,128], index: 4, kind: input, shape index: {}]
  %s5 = inlined_call_operand.vmem [shape: f32[1,128], index: 5, kind: input, shape index: {}]
  %s6 = inlined_call_operand.hbm [shape: f32[512,128], index: 6, kind: output, shape index: {}]
  %s7 = sld [smem:[#allocation0]]
  $region69: #{tpu_custom_call.1} parent=0
    _
  %s9 = ssub.s32 1, %s7
  %s10 = scalar_select 0, %s9, %s7
  $region1: #{tpu_custom_call.1} parent=0
    #allocation2 [shape = 'u8[524288]{0}', space=vmem, size = 0x80000, scoped, tag = 'input window, operand 0']
    #allocation3 [shape = 's32[2]{0}', space=sflag, size = 0x8, scoped, tag = 'scoped memory for tpu_custom_call.1']
    #allocation4 [shape = 's32[2]{0}', space=sflag, size = 0x8, scoped, tag = 'scoped memory for tpu_custom_call.1']
    #allocation5 [shape = 'u8[262144]{0}', space=vmem, size = 0x40000, scoped, tag = 'input window, operand 1']
    #allocation6 [shape = 's32[2]{0}', space=sflag, size = 0x8, scoped, tag = 'scoped memory for tpu_custom_call.1']
    #allocation7 [shape = 'u8[65536]{0}', space=vmem, size = 0x10000, scoped, tag = 'input window, operand 2, single buffered']
    #allocation8 [shape = 'u8[262144]{0}', space=vmem, size = 0x40000, scoped, tag = 'output window, operand 0']
    %11 = vsyncpa [#allocation3], 0
    %s12 = scalar_lea.sflag [#allocation3], 1
    %13 = vsyncpa %s12, 0
    %14 = vsyncpa [#allocation6], 0
    %s15 = scalar_lea.sflag [#allocation6], 1
    %16 = vsyncpa %s15, 0
    %17 = vsyncpa [#allocation4], 0
    %s18 = scalar_lea.sflag [#allocation4], 1
    %19 = vsyncpa %s18, 0
    loop: start=0, step=1, limit=4
    $region2: #{tpu_custom_call.1} parent=1 // loop_pre_header
      _
    $region3: #{tpu_custom_call.1} parent=1 // loop_header
      %s21 = sphi 0, %s25
      %p22 = scmp.ge.s32.totalorder %s21, 4
      %s31 = sphi 0, %s33
      %s34 = sphi 0, %s31
      %s35 = sphi 0, %s34
      %s51 = sphi 0, %s35
      %s57 = sphi 0, %s59
      %s60 = sphi 0, %s57
      %s61 = sphi 0, %s60
      %s77 = sphi 0, %s61
      %s81 = sphi 0, %s81
      %s83 = sphi 0, %s81
      %s84 = sphi 0, %s83
      %s98 = sphi 0, %s84
      %s102 = sphi 0, %s102
      %s104 = sphi 0, %s102
      %s105 = sphi 0, %s104
      %s119 = sphi 0, %s105
      %s123 = sphi 0, %s123
      %s125 = sphi 0, %s123
      %s126 = sphi 0, %s125
      %s140 = sphi 0, %s126
      %s144 = sphi 0, %s144
      %s146 = sphi 0, %s144
      %s147 = sphi 0, %s146
      %s161 = sphi 0, %s147
      %s167 = sphi 0, %s169
      %s170 = sphi 0, %s167
      %s171 = sphi 0, %s170
      %s187 = sphi 0, %s171
    $region4: #{tpu_custom_call.1} parent=1 // loop_header_branch
      %24 = sbr.rel (%p22) target = $region8
    $region5: #{tpu_custom_call.1} parent=1 // loop_body
      %s26 = ssub.s32 %s21, 1
      %s27 = ssub.s32 %s21, 2
      %s28 = sadd.s32 %s21, 1
      %s29 = ssub.s32 %s21, %s28
      %p30 = scmp.eq.s32.totalorder %s29, 0
      %s32 = sadd.s32 %s31, 1
      %s33 = scalar_select %p30, %s31, %s32
      %p36 = pneg %p30
      %p37 = scmp.eq.s32.totalorder %s21, 1
      %p38 = por %p36, %p37
      %p39 = scmp.ne.s32.totalorder %s31, %s34
      %p40 = scmp.eq.s32.totalorder %s21, 0
      %p41 = por %p39, %p40
      %p42 = scmp.ne.s32.totalorder %s31, %s34
      %p43 = scmp.eq.s32.totalorder %s26, 1
      %p44 = por %p42, %p43
      %p45 = scmp.ne.s32.totalorder %s34, %s35
      %p46 = scmp.eq.s32.totalorder %s26, 0
      %p47 = por %p45, %p46
      %p48 = scmp.ne.s32.totalorder %s34, %s35
      %p49 = scmp.eq.s32.totalorder %s27, 1
      %p50 = por %p48, %p49
      %p52 = scmp.ne.s32.totalorder %s35, %s51
      %p53 = scmp.eq.s32.totalorder %s27, 0
      %p54 = por %p52, %p53
      %s55 = ssub.s32 %s21, %s28
      %p56 = scmp.eq.s32.totalorder %s55, 0
      %s58 = sadd.s32 %s57, 1
      %s59 = scalar_select %p56, %s57, %s58
      %p62 = pneg %p56
      %p63 = scmp.eq.s32.totalorder %s21, 1
      %p64 = por %p62, %p63
      %p65 = scmp.ne.s32.totalorder %s57, %s60
      %p66 = scmp.eq.s32.totalorder %s21, 0
      %p67 = por %p65, %p66
      %p68 = scmp.ne.s32.totalorder %s57, %s60
      %p69 = scmp.eq.s32.totalorder %s26, 1
      %p70 = por %p68, %p69
      %p71 = scmp.ne.s32.totalorder %s60, %s61
      %p72 = scmp.eq.s32.totalorder %s26, 0
      %p73 = por %p71, %p72
      %p74 = scmp.ne.s32.totalorder %s60, %s61
      %p75 = scmp.eq.s32.totalorder %s27, 1
      %p76 = por %p74, %p75
      %p78 = scmp.ne.s32.totalorder %s61, %s77
      %p79 = scmp.eq.s32.totalorder %s27, 0
      %p80 = por %p78, %p79
      %s82 = sadd.s32 %s81, 1
      %p85 = scmp.eq.s32.totalorder %s21, 1
      %p86 = scmp.ne.s32.totalorder %s81, %s83
      %p87 = scmp.eq.s32.totalorder %s21, 0
      %p88 = por %p86, %p87
      %p89 = scmp.ne.s32.totalorder %s81, %s83
      %p90 = scmp.eq.s32.totalorder %s26, 1
      %p91 = por %p89, %p90
      %p92 = scmp.ne.s32.totalorder %s83, %s84
      %p93 = scmp.eq.s32.totalorder %s26, 0
      %p94 = por %p92, %p93
      %p95 = scmp.ne.s32.totalorder %s83, %s84
      %p96 = scmp.eq.s32.totalorder %s27, 1
      %p97 = por %p95, %p96
      %p99 = scmp.ne.s32.totalorder %s84, %s98
      %p100 = scmp.eq.s32.totalorder %s27, 0
      %p101 = por %p99, %p100
      %s103 = sadd.s32 %s102, 1
      %p106 = scmp.eq.s32.totalorder %s21, 1
      %p107 = scmp.ne.s32.totalorder %s102, %s104
      %p108 = scmp.eq.s32.totalorder %s21, 0
      %p109 = por %p107, %p108
      %p110 = scmp.ne.s32.totalorder %s102, %s104
      %p111 = scmp.eq.s32.totalorder %s26, 1
      %p112 = por %p110, %p111
      %p113 = scmp.ne.s32.totalorder %s104, %s105
      %p114 = scmp.eq.s32.totalorder %s26, 0
      %p115 = por %p113, %p114
      %p116 = scmp.ne.s32.totalorder %s104, %s105
      %p117 = scmp.eq.s32.totalorder %s27, 1
      %p118 = por %p116, %p117
      %p120 = scmp.ne.s32.totalorder %s105, %s119
      %p121 = scmp.eq.s32.totalorder %s27, 0
      %p122 = por %p120, %p121
      %s124 = sadd.s32 %s123, 1
      %p127 = scmp.eq.s32.totalorder %s21, 1
      %p128 = scmp.ne.s32.totalorder %s123, %s125
      %p129 = scmp.eq.s32.totalorder %s21, 0
      %p130 = por %p128, %p129
      %p131 = scmp.ne.s32.totalorder %s123, %s125
      %p132 = scmp.eq.s32.totalorder %s26, 1
      %p133 = por %p131, %p132
      %p134 = scmp.ne.s32.totalorder %s125, %s126
      %p135 = scmp.eq.s32.totalorder %s26, 0
      %p136 = por %p134, %p135
      %p137 = scmp.ne.s32.totalorder %s125, %s126
      %p138 = scmp.eq.s32.totalorder %s27, 1
      %p139 = por %p137, %p138
      %p141 = scmp.ne.s32.totalorder %s126, %s140
      %p142 = scmp.eq.s32.totalorder %s27, 0
      %p143 = por %p141, %p142
      %s145 = sadd.s32 %s144, 1
      %p148 = scmp.eq.s32.totalorder %s21, 1
      %p149 = scmp.ne.s32.totalorder %s144, %s146
      %p150 = scmp.eq.s32.totalorder %s21, 0
      %p151 = por %p149, %p150
      %p152 = scmp.ne.s32.totalorder %s144, %s146
      %p153 = scmp.eq.s32.totalorder %s26, 1
      %p154 = por %p152, %p153
      %p155 = scmp.ne.s32.totalorder %s146, %s147
      %p156 = scmp.eq.s32.totalorder %s26, 0
      %p157 = por %p155, %p156
      %p158 = scmp.ne.s32.totalorder %s146, %s147
      %p159 = scmp.eq.s32.totalorder %s27, 1
      %p160 = por %p158, %p159
      %p162 = scmp.ne.s32.totalorder %s147, %s161
      %p163 = scmp.eq.s32.totalorder %s27, 0
      %p164 = por %p162, %p163
      %s165 = ssub.s32 %s21, %s28
      %p166 = scmp.eq.s32.totalorder %s165, 0
      %s168 = sadd.s32 %s167, 1
      %s169 = scalar_select %p166, %s167, %s168
      %p172 = pneg %p166
      %p173 = scmp.eq.s32.totalorder %s21, 1
      %p174 = por %p172, %p173
      %p175 = scmp.ne.s32.totalorder %s167, %s170
      %p176 = scmp.eq.s32.totalorder %s21, 0
      %p177 = por %p175, %p176
      %p178 = scmp.ne.s32.totalorder %s167, %s170
      %p179 = scmp.eq.s32.totalorder %s26, 1
      %p180 = por %p178, %p179
      %p181 = scmp.ne.s32.totalorder %s170, %s171
      %p182 = scmp.eq.s32.totalorder %s26, 0
      %p183 = por %p181, %p182
      %p184 = scmp.ne.s32.totalorder %s170, %s171
      %p185 = scmp.eq.s32.totalorder %s27, 1
      %p186 = por %p184, %p185
      %p188 = scmp.ne.s32.totalorder %s171, %s187
      %p189 = scmp.eq.s32.totalorder %s27, 0
      %p190 = por %p188, %p189
      %p191 = scmp.le.s32.totalorder 1, %s21
      %p192 = scmp.lt.s32.totalorder %s21, 3
      %p193 = pnand %p191, %p192
      %p194 = pneg %p193
      // Predicated region
      $region9: #{tpu_custom_call.1} parent=5 // pred_check
        _
      $region10: #{tpu_custom_call.1} parent=5 // pred_check_branch
        %196 = sbr.rel (%p193) target = $region12
      $region11: #{tpu_custom_call.1} parent=5 // pred_region
        %s197 = ssub.s32 %s21, 1
        // Predicated region
        $region13: #{tpu_custom_call.1} parent=11 // pred_check
          %p198 = pneg %p94
        $region14: #{tpu_custom_call.1} parent=11 // pred_check_branch
          %200 = sbr.rel (%p198) target = $region16
        $region15: #{tpu_custom_call.1} parent=11 // pred_region
          %s202 = ssub.s32 2048, 2048
          %203 = vsyncadd [#allocation6], %s202
          %s204 = sshll.u32 [#allocation7], 4
          %s205 = int_to_ptr.vmem [resolvable:$true] %s204
          %210 = dma.hbm_to_vmem [thread:$0]  %s2, 2048, %s205, [#allocation6], 64, 64, 4
        $region16: #{tpu_custom_call.1} parent=11 // pred_fallthru
          _
        // Predicated region
        $region17: #{tpu_custom_call.1} parent=11 // pred_check
          %p211 = pneg %p115
        $region18: #{tpu_custom_call.1} parent=11 // pred_check_branch
          %213 = sbr.rel (%p211) target = $region20
        $region19: #{tpu_custom_call.1} parent=11 // pred_region
          _
        $region20: #{tpu_custom_call.1} parent=11 // pred_fallthru
          _
        // Predicated region
        $region21: #{tpu_custom_call.1} parent=11 // pred_check
          %p214 = pneg %p136
        $region22: #{tpu_custom_call.1} parent=11 // pred_check_branch
          %216 = sbr.rel (%p214) target = $region24
        $region23: #{tpu_custom_call.1} parent=11 // pred_region
          _
        $region24: #{tpu_custom_call.1} parent=11 // pred_fallthru
          _
        // Predicated region
        $region25: #{tpu_custom_call.1} parent=11 // pred_check
          %p217 = pneg %p157
        $region26: #{tpu_custom_call.1} parent=11 // pred_check_branch
          %219 = sbr.rel (%p217) target = $region28
        $region27: #{tpu_custom_call.1} parent=11 // pred_region
          _
        $region28: #{tpu_custom_call.1} parent=11 // pred_fallthru
          _
      $region12: #{tpu_custom_call.1} parent=5 // pred_fallthru
        _
      %p220 = scmp.lt.s32.totalorder %s21, 2
      // Predicated region
      $region29: #{tpu_custom_call.1} parent=5 // pred_check
        %p221 = pneg %p220
      $region30: #{tpu_custom_call.1} parent=5 // pred_check_branch
        %223 = sbr.rel (%p221) target = $region32
      $region31: #{tpu_custom_call.1} parent=5 // pred_region
        // Predicated region
        $region33: #{tpu_custom_call.1} parent=31 // pred_check
          %p224 = pneg %p41
        $region34: #{tpu_custom_call.1} parent=31 // pred_check_branch
          %226 = sbr.rel (%p224) target = $region36
        $region35: #{tpu_custom_call.1} parent=31 // pred_region
          %s227 = sand.u32 %s31, 1
          %s228 = scalar_lea.sflag [#allocation3], %s227
          %s229 = sand.u32 %s31, 1
          %s230 = smul.addr %s229, 512
          %s231 = scalar_lea.vmem [#allocation2], %s230
          %s232 = smul.u32 32, %s21
          %s234 = ssub.s32 8192, 8192
          %235 = vsyncadd %s228, %s234
          %s236 = smul.addr %s232, 2
          %s237 = smul.addr %s236, 128
          %s238 = scalar_lea.hbm %s0, %s237
          %s239 = sshll.u32 %s231, 4
          %s240 = int_to_ptr.vmem [resolvable:$true] %s239
          %245 = dma.hbm_to_vmem [thread:$0]  %s238, 8192, %s240, %s228, 256, 256, 16
        $region36: #{tpu_custom_call.1} parent=31 // pred_fallthru
          _
        // Predicated region
        $region37: #{tpu_custom_call.1} parent=31 // pred_check
          %p246 = pneg %p67
        $region38: #{tpu_custom_call.1} parent=31 // pred_check_branch
          %248 = sbr.rel (%p246) target = $region40
        $region39: #{tpu_custom_call.1} parent=31 // pred_region
          %s249 = sand.u32 %s21, 1
          %s250 = scalar_lea.sflag [#allocation6], %s249
          %s251 = sand.u32 %s57, 1
          %s252 = smul.addr %s251, 256
          %s253 = scalar_lea.vmem [#allocation5], %s252
          %s254 = smul.u32 32, %s21
          %s256 = ssub.s32 4096, 4096
          %257 = vsyncadd %s250, %s256
          %s258 = smul.addr %s254, 128
          %s259 = scalar_lea.hbm %s1, %s258
          %s260 = sshll.u32 %s253, 4
          %s261 = int_to_ptr.vmem [resolvable:$true] %s260
          %266 = dma.hbm_to_vmem [thread:$0]  %s259, 4096, %s261, %s250, 128, 128, 8
        $region40: #{tpu_custom_call.1} parent=31 // pred_fallthru
          _
      $region32: #{tpu_custom_call.1} parent=5 // pred_fallthru
        _
      %p267 = scmp.le.s32.totalorder 1, %s21
      %p268 = scmp.lt.s32.totalorder %s21, 3
      %p269 = pnand %p267, %p268
      %p270 = pneg %p269
      // Predicated region
      $region41: #{tpu_custom_call.1} parent=5 // pred_check
        _
      $region42: #{tpu_custom_call.1} parent=5 // pred_check_branch
        %272 = sbr.rel (%p269) target = $region44
      $region43: #{tpu_custom_call.1} parent=5 // pred_region
        %s273 = ssub.s32 %s21, 1
        %s274 = sand.u32 %s34, 1
        %s275 = scalar_lea.sflag [#allocation3], %s274
        %s276 = sand.u32 %s34, 1
        %s277 = smul.addr %s276, 512
        %s278 = scalar_lea.vmem [#allocation2], %s277
        // Predicated region
        $region45: #{tpu_custom_call.1} parent=43 // pred_check
          %p279 = pneg %p47
        $region46: #{tpu_custom_call.1} parent=43 // pred_check_branch
          %281 = sbr.rel (%p279) target = $region48
        $region47: #{tpu_custom_call.1} parent=43 // pred_region
          %282 = dma.done %s275, 8192
        $region48: #{tpu_custom_call.1} parent=43 // pred_fallthru
          _
        %s283 = sand.u32 %s26, 1
        %s284 = scalar_lea.sflag [#allocation6], %s283
        %s285 = sand.u32 %s60, 1
        %s286 = smul.addr %s285, 256
        %s287 = scalar_lea.vmem [#allocation5], %s286
        // Predicated region
        $region49: #{tpu_custom_call.1} parent=43 // pred_check
          %p288 = pneg %p73
        $region50: #{tpu_custom_call.1} parent=43 // pred_check_branch
          %290 = sbr.rel (%p288) target = $region52
        $region51: #{tpu_custom_call.1} parent=43 // pred_region
          %291 = dma.done %s284, 4096
        $region52: #{tpu_custom_call.1} parent=43 // pred_fallthru
          _
        // Predicated region
        $region53: #{tpu_custom_call.1} parent=43 // pred_check
          %p292 = pneg %p94
        $region54: #{tpu_custom_call.1} parent=43 // pred_check_branch
          %294 = sbr.rel (%p292) target = $region56
        $region55: #{tpu_custom_call.1} parent=43 // pred_region
          %295 = dma.done [#allocation6], 2048
        $region56: #{tpu_custom_call.1} parent=43 // pred_fallthru
          _
        %s296 = sand.u32 %s34, 1
        %s297 = scalar_lea.sflag [#allocation3], %s296
        %s298 = sand.u32 %s34, 1
        %s299 = smul.addr %s298, 512
        %s300 = scalar_lea.vmem [#allocation2], %s299
        %p301 = pneg %p47
        %p302 = pneg %p44
        %s303 = sand.u32 %s26, 1
        %s304 = scalar_lea.sflag [#allocation6], %s303
        %s305 = sand.u32 %s60, 1
        %s306 = smul.addr %s305, 256
        %s307 = scalar_lea.vmem [#allocation5], %s306
        %p308 = pneg %p73
        %p309 = pneg %p70
        %p310 = pneg %p94
        %p311 = pneg %p91
        %p312 = pneg %p115
        %p313 = pneg %p112
        %p314 = pneg %p136
        %p315 = pneg %p133
        %p316 = pneg %p157
        %p317 = pneg %p154
        %p318 = pneg %p183
        %p319 = pneg %p180
        %s320 = sand.u32 %s170, 1
        %s321 = scalar_lea.sflag [#allocation4], %s320
        %s322 = sand.u32 %s170, 1
        %s323 = smul.addr %s322, 256
        %s324 = scalar_lea.vmem [#allocation8], %s323
        %s325 = smul.u32 32, %s26
        %s326 = smul.u32 32, %s26
        %s327 = smul.u32 32, %s26
        %v329 = vld [vmem:[%s278] sm:$0xff]
        %v330 = vld [vmem:[%s278 + $0x8] sm:$0xff]
        %v331 = vld [vmem:[%s278 + $0x10] sm:$0xff]
        %v332 = vld [vmem:[%s278 + $0x18] sm:$0xff]
        %v333 = vld [vmem:[%s278 + $0x20] sm:$0xff]
        %v334 = vld [vmem:[%s278 + $0x28] sm:$0xff]
        %v335 = vld [vmem:[%s278 + $0x30] sm:$0xff]
        %v336 = vld [vmem:[%s278 + $0x38] sm:$0xff]
        %v337 = vld [vmem:[%s278 + $0x40] sm:$0xff]
        %v338 = vld [vmem:[%s278 + $0x48] sm:$0xff]
        %v339 = vld [vmem:[%s278 + $0x50] sm:$0xff]
        %v340 = vld [vmem:[%s278 + $0x58] sm:$0xff]
        %v341 = vld [vmem:[%s278 + $0x60] sm:$0xff]
        %v342 = vld [vmem:[%s278 + $0x68] sm:$0xff]
        %v343 = vld [vmem:[%s278 + $0x70] sm:$0xff]
        %v344 = vld [vmem:[%s278 + $0x78] sm:$0xff]
        %v345 = vld [vmem:[%s278 + $0x80] sm:$0xff]
        %v346 = vld [vmem:[%s278 + $0x88] sm:$0xff]
        %v347 = vld [vmem:[%s278 + $0x90] sm:$0xff]
        %v348 = vld [vmem:[%s278 + $0x98] sm:$0xff]
        %v349 = vld [vmem:[%s278 + $0xa0] sm:$0xff]
        %v350 = vld [vmem:[%s278 + $0xa8] sm:$0xff]
        %v351 = vld [vmem:[%s278 + $0xb0] sm:$0xff]
        %v352 = vld [vmem:[%s278 + $0xb8] sm:$0xff]
        %v353 = vld [vmem:[%s278 + $0xc0] sm:$0xff]
        %v354 = vld [vmem:[%s278 + $0xc8] sm:$0xff]
        %v355 = vld [vmem:[%s278 + $0xd0] sm:$0xff]
        %v356 = vld [vmem:[%s278 + $0xd8] sm:$0xff]
        %v357 = vld [vmem:[%s278 + $0xe0] sm:$0xff]
        %v358 = vld [vmem:[%s278 + $0xe8] sm:$0xff]
        %v359 = vld [vmem:[%s278 + $0xf0] sm:$0xff]
        %v360 = vld [vmem:[%s278 + $0xf8] sm:$0xff]
        %v361 = vld [vmem:[%s278 + $0x100] sm:$0xff]
        %v362 = vld [vmem:[%s278 + $0x108] sm:$0xff]
        %v363 = vld [vmem:[%s278 + $0x110] sm:$0xff]
        %v364 = vld [vmem:[%s278 + $0x118] sm:$0xff]
        %v365 = vld [vmem:[%s278 + $0x120] sm:$0xff]
        %v366 = vld [vmem:[%s278 + $0x128] sm:$0xff]
        %v367 = vld [vmem:[%s278 + $0x130] sm:$0xff]
        %v368 = vld [vmem:[%s278 + $0x138] sm:$0xff]
        %v369 = vld [vmem:[%s278 + $0x140] sm:$0xff]
        %v370 = vld [vmem:[%s278 + $0x148] sm:$0xff]
        %v371 = vld [vmem:[%s278 + $0x150] sm:$0xff]
        %v372 = vld [vmem:[%s278 + $0x158] sm:$0xff]
        %v373 = vld [vmem:[%s278 + $0x160] sm:$0xff]
        %v374 = vld [vmem:[%s278 + $0x168] sm:$0xff]
        %v375 = vld [vmem:[%s278 + $0x170] sm:$0xff]
        %v376 = vld [vmem:[%s278 + $0x178] sm:$0xff]
        %v377 = vld [vmem:[%s278 + $0x180] sm:$0xff]
        %v378 = vld [vmem:[%s278 + $0x188] sm:$0xff]
        %v379 = vld [vmem:[%s278 + $0x190] sm:$0xff]
        %v380 = vld [vmem:[%s278 + $0x198] sm:$0xff]
        %v381 = vld [vmem:[%s278 + $0x1a0] sm:$0xff]
        %v382 = vld [vmem:[%s278 + $0x1a8] sm:$0xff]
        %v383 = vld [vmem:[%s278 + $0x1b0] sm:$0xff]
        %v384 = vld [vmem:[%s278 + $0x1b8] sm:$0xff]
        %v385 = vld [vmem:[%s278 + $0x1c0] sm:$0xff]
        %v386 = vld [vmem:[%s278 + $0x1c8] sm:$0xff]
        %v387 = vld [vmem:[%s278 + $0x1d0] sm:$0xff]
        %v388 = vld [vmem:[%s278 + $0x1d8] sm:$0xff]
        %v389 = vld [vmem:[%s278 + $0x1e0] sm:$0xff]
        %v390 = vld [vmem:[%s278 + $0x1e8] sm:$0xff]
        %v391 = vld [vmem:[%s278 + $0x1f0] sm:$0xff]
        %v392 = vld [vmem:[%s278 + $0x1f8] sm:$0xff]
        %v393 = vpack.c.bf16 %v331, %v329
        %v394 = vpack.c.bf16 %v332, %v330
        %v395 = vpack.c.bf16 %v335, %v333
        %v396 = vpack.c.bf16 %v336, %v334
        %v397 = vpack.c.bf16 %v339, %v337
        %v398 = vpack.c.bf16 %v340, %v338
        %v399 = vpack.c.bf16 %v343, %v341
        %v400 = vpack.c.bf16 %v344, %v342
        %v401 = vpack.c.bf16 %v347, %v345
        %v402 = vpack.c.bf16 %v348, %v346
        %v403 = vpack.c.bf16 %v351, %v349
        %v404 = vpack.c.bf16 %v352, %v350
        %v405 = vpack.c.bf16 %v355, %v353
        %v406 = vpack.c.bf16 %v356, %v354
        %v407 = vpack.c.bf16 %v359, %v357
        %v408 = vpack.c.bf16 %v360, %v358
        %v409 = vpack.c.bf16 %v363, %v361
        %v410 = vpack.c.bf16 %v364, %v362
        %v411 = vpack.c.bf16 %v367, %v365
        %v412 = vpack.c.bf16 %v368, %v366
        %v413 = vpack.c.bf16 %v371, %v369
        %v414 = vpack.c.bf16 %v372, %v370
        %v415 = vpack.c.bf16 %v375, %v373
        %v416 = vpack.c.bf16 %v376, %v374
        %v417 = vpack.c.bf16 %v379, %v377
        %v418 = vpack.c.bf16 %v380, %v378
        %v419 = vpack.c.bf16 %v383, %v381
        %v420 = vpack.c.bf16 %v384, %v382
        %v421 = vpack.c.bf16 %v387, %v385
        %v422 = vpack.c.bf16 %v388, %v386
        %v423 = vpack.c.bf16 %v391, %v389
        %v424 = vpack.c.bf16 %v392, %v390
        %v425 = vld [vmem:[#allocation7] sm:$0xf]
        %v426 = vld [vmem:[#allocation7 + $0x4] sm:$0xf]
        %v427 = vld [vmem:[#allocation7 + $0x8] sm:$0xf]
        %v428 = vld [vmem:[#allocation7 + $0xc] sm:$0xf]
        %v429 = vld [vmem:[#allocation7 + $0x10] sm:$0xf]
        %v430 = vld [vmem:[#allocation7 + $0x14] sm:$0xf]
        %v431 = vld [vmem:[#allocation7 + $0x18] sm:$0xf]
        %v432 = vld [vmem:[#allocation7 + $0x1c] sm:$0xf]
        %v433 = vld [vmem:[#allocation7 + $0x20] sm:$0xf]
        %v434 = vld [vmem:[#allocation7 + $0x24] sm:$0xf]
        %v435 = vld [vmem:[#allocation7 + $0x28] sm:$0xf]
        %v436 = vld [vmem:[#allocation7 + $0x2c] sm:$0xf]
        %v437 = vld [vmem:[#allocation7 + $0x30] sm:$0xf]
        %v438 = vld [vmem:[#allocation7 + $0x34] sm:$0xf]
        %v439 = vld [vmem:[#allocation7 + $0x38] sm:$0xf]
        %v440 = vld [vmem:[#allocation7 + $0x3c] sm:$0xf]
        %v441 = vld [vmem:[#allocation7 + $0x40] sm:$0xf]
        %v442 = vld [vmem:[#allocation7 + $0x44] sm:$0xf]
        %v443 = vld [vmem:[#allocation7 + $0x48] sm:$0xf]
        %v444 = vld [vmem:[#allocation7 + $0x4c] sm:$0xf]
        %v445 = vld [vmem:[#allocation7 + $0x50] sm:$0xf]
        %v446 = vld [vmem:[#allocation7 + $0x54] sm:$0xf]
        %v447 = vld [vmem:[#allocation7 + $0x58] sm:$0xf]
        %v448 = vld [vmem:[#allocation7 + $0x5c] sm:$0xf]
        %v449 = vld [vmem:[#allocation7 + $0x60] sm:$0xf]
        %v450 = vld [vmem:[#allocation7 + $0x64] sm:$0xf]
        %v451 = vld [vmem:[#allocation7 + $0x68] sm:$0xf]
        %v452 = vld [vmem:[#allocation7 + $0x6c] sm:$0xf]
        %v453 = vld [vmem:[#allocation7 + $0x70] sm:$0xf]
        %v454 = vld [vmem:[#allocation7 + $0x74] sm:$0xf]
        %v455 = vld [vmem:[#allocation7 + $0x78] sm:$0xf]
        %v456 = vld [vmem:[#allocation7 + $0x7c] sm:$0xf]
        %v457 = vld [vmem:[%s3] sm:$0x1]
        %v459 = vlaneseq
        %v460 = vshrl.u32 %v459, 7
        %v461 = vsub.s32 0, %v460
        %v462 = vrot.slane %v457, %v461
        %v496 = vunpack.c.l.b16 %v425
        %v497 = vunpack.c.l.b16 %v426
        %v498 = vunpack.c.l.b16 %v427
        %v499 = vunpack.c.l.b16 %v428
        %v500 = vunpack.c.l.b16 %v429
        %v501 = vunpack.c.l.b16 %v430
        %v502 = vunpack.c.l.b16 %v431
        %v503 = vunpack.c.l.b16 %v432
        %v504 = vunpack.c.l.b16 %v433
        %v505 = vunpack.c.l.b16 %v434
        %v506 = vunpack.c.l.b16 %v435
        %v507 = vunpack.c.l.b16 %v436
        %v508 = vunpack.c.l.b16 %v437
        %v509 = vunpack.c.l.b16 %v438
        %v510 = vunpack.c.l.b16 %v439
        %v511 = vunpack.c.l.b16 %v440
        %v512 = vunpack.c.l.b16 %v441
        %v513 = vunpack.c.l.b16 %v442
        %v514 = vunpack.c.l.b16 %v443
        %v515 = vunpack.c.l.b16 %v444
        %v516 = vunpack.c.l.b16 %v445
        %v517 = vunpack.c.l.b16 %v446
        %v518 = vunpack.c.l.b16 %v447
        %v519 = vunpack.c.l.b16 %v448
        %v520 = vunpack.c.l.b16 %v449
        %v521 = vunpack.c.l.b16 %v450
        %v522 = vunpack.c.l.b16 %v451
        %v523 = vunpack.c.l.b16 %v452
        %v524 = vunpack.c.l.b16 %v453
        %v525 = vunpack.c.l.b16 %v454
        %v526 = vunpack.c.l.b16 %v455
        %v527 = vunpack.c.l.b16 %v456
        %v528 = vpack.c.b16 %v497, %v496
        %v529 = vpack.c.b16 %v499, %v498
        %v530 = vpack.c.b16 %v501, %v500
        %v531 = vpack.c.b16 %v503, %v502
        %v532 = vpack.c.b16 %v505, %v504
        %v533 = vpack.c.b16 %v507, %v506
        %v534 = vpack.c.b16 %v509, %v508
        %v535 = vpack.c.b16 %v511, %v510
        %v536 = vpack.c.b16 %v513, %v512
        %v537 = vpack.c.b16 %v515, %v514
        %v538 = vpack.c.b16 %v517, %v516
        %v539 = vpack.c.b16 %v519, %v518
        %v540 = vpack.c.b16 %v521, %v520
        %v541 = vpack.c.b16 %v523, %v522
        %v542 = vpack.c.b16 %v525, %v524
        %v543 = vpack.c.b16 %v527, %v526
        %560 = vmatprep.subr.bf16.mxu0 0
        %561 = vmatpush1.bf16.msra.mxu0 %v528
        %562 = vmatprep.subr.bf16.mxu0 0
        %563 = vmatpush1.bf16.msra.mxu0 %v529
        %564 = vmatprep.subr.bf16.mxu0 0
        %565 = vmatpush1.bf16.msra.mxu0 %v530
        %566 = vmatprep.subr.bf16.mxu0 0
        %567 = vmatpush1.bf16.msra.mxu0 %v531
        %568 = vmatprep.subr.bf16.mxu0 0
        %569 = vmatpush1.bf16.msra.mxu0 %v532
        %570 = vmatprep.subr.bf16.mxu0 0
        %571 = vmatpush1.bf16.msra.mxu0 %v533
        %572 = vmatprep.subr.bf16.mxu0 0
        %573 = vmatpush1.bf16.msra.mxu0 %v534
        %574 = vmatprep.subr.bf16.mxu0 0
        %575 = vmatpush1.bf16.msra.mxu0 %v535
        %576 = vmatprep.subr.bf16.mxu0 0
        %577 = vmatpush1.bf16.msra.mxu0 %v536
        %578 = vmatprep.subr.bf16.mxu0 0
        %579 = vmatpush1.bf16.msra.mxu0 %v537
        %580 = vmatprep.subr.bf16.mxu0 0
        %581 = vmatpush1.bf16.msra.mxu0 %v538
        %582 = vmatprep.subr.bf16.mxu0 0
        %583 = vmatpush1.bf16.msra.mxu0 %v539
        %584 = vmatprep.subr.bf16.mxu0 0
        %585 = vmatpush1.bf16.msra.mxu0 %v540
        %586 = vmatprep.subr.bf16.mxu0 0
        %587 = vmatpush1.bf16.msra.mxu0 %v541
        %588 = vmatprep.subr.bf16.mxu0 0
        %589 = vmatpush1.bf16.msra.mxu0 %v542
        %590 = vmatprep.subr.bf16.mxu0 0
        %591 = vmatpush1.bf16.msra.mxu0 %v543
        %592 = vmatprep.mubr.bf16.mxu0 %v394
        %593 = vmatmul.mubr.bf16.gmra.mrb[0].mxu0 %v393
        %v594 = vpop.f32.mrb[0].mxu0
        %v595 = vadd.f32 %v462, %v594
        %v596 = vpop.f32.mrb[0].mxu0
        %v597 = vpop.f32.mrb[0].mxu0
        %v598 = vadd.f32 %v462, %v597
        %v599 = vpop.f32.mrb[0].mxu0
        %600 = vmatprep.mubr.bf16.mxu0 %v396
        %601 = vmatmul.mubr.bf16.gmra.mrb[0].mxu0 %v395
        %v602 = vpop.f32.mrb[0].mxu0
        %v603 = vadd.f32 %v462, %v602
        %v604 = vpop.f32.mrb[0].mxu0
        %v605 = vpop.f32.mrb[0].mxu0
        %v606 = vadd.f32 %v462, %v605
        %v607 = vpop.f32.mrb[0].mxu0
        %608 = vmatprep.mubr.bf16.mxu0 %v398
        %609 = vmatmul.mubr.bf16.gmra.mrb[0].mxu0 %v397
        %v610 = vpop.f32.mrb[0].mxu0
        %v611 = vadd.f32 %v462, %v610
        %v612 = vpop.f32.mrb[0].mxu0
        %v613 = vpop.f32.mrb[0].mxu0
        %v614 = vadd.f32 %v462, %v613
        %v615 = vpop.f32.mrb[0].mxu0
        %616 = vmatprep.mubr.bf16.mxu0 %v400
        %617 = vmatmul.mubr.bf16.gmra.mrb[0].mxu0 %v399
        %v618 = vpop.f32.mrb[0].mxu0
        %v619 = vadd.f32 %v462, %v618
        %v620 = vpop.f32.mrb[0].mxu0
        %v621 = vpop.f32.mrb[0].mxu0
        %v622 = vadd.f32 %v462, %v621
        %v623 = vpop.f32.mrb[0].mxu0
        %624 = vmatprep.mubr.bf16.mxu0 %v402
        %625 = vmatmul.mubr.bf16.gmra.mrb[0].mxu0 %v401
        %v626 = vpop.f32.mrb[0].mxu0
        %v627 = vadd.f32 %v462, %v626
        %v628 = vpop.f32.mrb[0].mxu0
        %v629 = vpop.f32.mrb[0].mxu0
        %v630 = vadd.f32 %v462, %v629
        %v631 = vpop.f32.mrb[0].mxu0
        %632 = vmatprep.mubr.bf16.mxu0 %v404
        %633 = vmatmul.mubr.bf16.gmra.mrb[0].mxu0 %v403
        %v634 = vpop.f32.mrb[0].mxu0
        %v635 = vadd.f32 %v462, %v634
        %v636 = vpop.f32.mrb[0].mxu0
        %v637 = vpop.f32.mrb[0].mxu0
        %v638 = vadd.f32 %v462, %v637
        %v639 = vpop.f32.mrb[0].mxu0
        %640 = vmatprep.mubr.bf16.mxu0 %v406
        %641 = vmatmul.mubr.bf16.gmra.mrb[0].mxu0 %v405
        %v642 = vpop.f32.mrb[0].mxu0
        %v643 = vadd.f32 %v462, %v642
        %v644 = vpop.f32.mrb[0].mxu0
        %v645 = vpop.f32.mrb[0].mxu0
        %v646 = vadd.f32 %v462, %v645
        %v647 = vpop.f32.mrb[0].mxu0
        %648 = vmatprep.mubr.bf16.mxu0 %v408
        %649 = vmatmul.mubr.bf16.gmra.mrb[0].mxu0 %v407
        %v650 = vpop.f32.mrb[0].mxu0
        %v651 = vadd.f32 %v462, %v650
        %v652 = vpop.f32.mrb[0].mxu0
        %v653 = vpop.f32.mrb[0].mxu0
        %v654 = vadd.f32 %v462, %v653
        %v655 = vpop.f32.mrb[0].mxu0
        %656 = vmatprep.mubr.bf16.mxu0 %v410
        %657 = vmatmul.mubr.bf16.gmra.mrb[0].mxu0 %v409
        %v658 = vpop.f32.mrb[0].mxu0
        %v659 = vadd.f32 %v462, %v658
        %v660 = vpop.f32.mrb[0].mxu0
        %v661 = vpop.f32.mrb[0].mxu0
        %v662 = vadd.f32 %v462, %v661
        %v663 = vpop.f32.mrb[0].mxu0
        %664 = vmatprep.mubr.bf16.mxu0 %v412
        %665 = vmatmul.mubr.bf16.gmra.mrb[0].mxu0 %v411
        %v666 = vpop.f32.mrb[0].mxu0
        %v667 = vadd.f32 %v462, %v666
        %v668 = vpop.f32.mrb[0].mxu0
        %v669 = vpop.f32.mrb[0].mxu0
        %v670 = vadd.f32 %v462, %v669
        %v671 = vpop.f32.mrb[0].mxu0
        %672 = vmatprep.mubr.bf16.mxu0 %v414
        %673 = vmatmul.mubr.bf16.gmra.mrb[0].mxu0 %v413
        %v674 = vpop.f32.mrb[0].mxu0
        %v675 = vadd.f32 %v462, %v674
        %v676 = vpop.f32.mrb[0].mxu0
        %v677 = vpop.f32.mrb[0].mxu0
        %v678 = vadd.f32 %v462, %v677
        %v679 = vpop.f32.mrb[0].mxu0
        %680 = vmatprep.mubr.bf16.mxu0 %v416
        %681 = vmatmul.mubr.bf16.gmra.mrb[0].mxu0 %v415
        %v682 = vpop.f32.mrb[0].mxu0
        %v683 = vadd.f32 %v462, %v682
        %v684 = vpop.f32.mrb[0].mxu0
        %v685 = vpop.f32.mrb[0].mxu0
        %v686 = vadd.f32 %v462, %v685
        %v687 = vpop.f32.mrb[0].mxu0
        %688 = vmatprep.mubr.bf16.mxu0 %v418
        %689 = vmatmul.mubr.bf16.gmra.mrb[0].mxu0 %v417
        %v690 = vpop.f32.mrb[0].mxu0
        %v691 = vadd.f32 %v462, %v690
        %v692 = vpop.f32.mrb[0].mxu0
        %v693 = vpop.f32.mrb[0].mxu0
        %v694 = vadd.f32 %v462, %v693
        %v695 = vpop.f32.mrb[0].mxu0
        %696 = vmatprep.mubr.bf16.mxu0 %v420
        %697 = vmatmul.mubr.bf16.gmra.mrb[0].mxu0 %v419
        %v698 = vpop.f32.mrb[0].mxu0
        %v699 = vadd.f32 %v462, %v698
        %v700 = vpop.f32.mrb[0].mxu0
        %v701 = vpop.f32.mrb[0].mxu0
        %v702 = vadd.f32 %v462, %v701
        %v703 = vpop.f32.mrb[0].mxu0
        %704 = vmatprep.mubr.bf16.mxu0 %v422
        %705 = vmatmul.mubr.bf16.gmra.mrb[0].mxu0 %v421
        %v706 = vpop.f32.mrb[0].mxu0
        %v707 = vadd.f32 %v462, %v706
        %v708 = vpop.f32.mrb[0].mxu0
        %v709 = vpop.f32.mrb[0].mxu0
        %v710 = vadd.f32 %v462, %v709
        %v711 = vpop.f32.mrb[0].mxu0
        %712 = vmatprep.mubr.bf16.mxu0 %v424
        %713 = vmatmul.mubr.bf16.gmra.mrb[0].mxu0 %v423
        %v714 = vpop.f32.mrb[0].mxu0
        %v715 = vadd.f32 %v462, %v714
        %v716 = vpop.f32.mrb[0].mxu0
        %v717 = vpop.f32.mrb[0].mxu0
        %v718 = vadd.f32 %v462, %v717
        %v719 = vpop.f32.mrb[0].mxu0
        %720 = vdwg.mxu0
        %v721 = vld [vmem:[%s287] sm:$0xff]
        %v722 = vld [vmem:[%s287 + $0x8] sm:$0xff]
        %v723 = vld [vmem:[%s287 + $0x10] sm:$0xff]
        %v724 = vld [vmem:[%s287 + $0x18] sm:$0xff]
        %v725 = vld [vmem:[%s287 + $0x20] sm:$0xff]
        %v726 = vld [vmem:[%s287 + $0x28] sm:$0xff]
        %v727 = vld [vmem:[%s287 + $0x30] sm:$0xff]
        %v728 = vld [vmem:[%s287 + $0x38] sm:$0xff]
        %v729 = vld [vmem:[%s287 + $0x40] sm:$0xff]
        %v730 = vld [vmem:[%s287 + $0x48] sm:$0xff]
        %v731 = vld [vmem:[%s287 + $0x50] sm:$0xff]
        %v732 = vld [vmem:[%s287 + $0x58] sm:$0xff]
        %v733 = vld [vmem:[%s287 + $0x60] sm:$0xff]
        %v734 = vld [vmem:[%s287 + $0x68] sm:$0xff]
        %v735 = vld [vmem:[%s287 + $0x70] sm:$0xff]
        %v736 = vld [vmem:[%s287 + $0x78] sm:$0xff]
        %v737 = vld [vmem:[%s287 + $0x80] sm:$0xff]
        %v738 = vld [vmem:[%s287 + $0x88] sm:$0xff]
        %v739 = vld [vmem:[%s287 + $0x90] sm:$0xff]
        %v740 = vld [vmem:[%s287 + $0x98] sm:$0xff]
        %v741 = vld [vmem:[%s287 + $0xa0] sm:$0xff]
        %v742 = vld [vmem:[%s287 + $0xa8] sm:$0xff]
        %v743 = vld [vmem:[%s287 + $0xb0] sm:$0xff]
        %v744 = vld [vmem:[%s287 + $0xb8] sm:$0xff]
        %v745 = vld [vmem:[%s287 + $0xc0] sm:$0xff]
        %v746 = vld [vmem:[%s287 + $0xc8] sm:$0xff]
        %v747 = vld [vmem:[%s287 + $0xd0] sm:$0xff]
        %v748 = vld [vmem:[%s287 + $0xd8] sm:$0xff]
        %v749 = vld [vmem:[%s287 + $0xe0] sm:$0xff]
        %v750 = vld [vmem:[%s287 + $0xe8] sm:$0xff]
        %v751 = vld [vmem:[%s287 + $0xf0] sm:$0xff]
        %v752 = vld [vmem:[%s287 + $0xf8] sm:$0xff]
        %v753 = vadd.f32 %v595, %v721
        %v754 = vadd.f32 %v598, %v722
        %v755 = vadd.f32 %v603, %v723
        %v756 = vadd.f32 %v606, %v724
        %v757 = vadd.f32 %v611, %v725
        %v758 = vadd.f32 %v614, %v726
        %v759 = vadd.f32 %v619, %v727
        %v760 = vadd.f32 %v622, %v728
        %v761 = vadd.f32 %v627, %v729
        %v762 = vadd.f32 %v630, %v730
        %v763 = vadd.f32 %v635, %v731
        %v764 = vadd.f32 %v638, %v732
        %v765 = vadd.f32 %v643, %v733
        %v766 = vadd.f32 %v646, %v734
        %v767 = vadd.f32 %v651, %v735
        %v768 = vadd.f32 %v654, %v736
        %v769 = vadd.f32 %v659, %v737
        %v770 = vadd.f32 %v662, %v738
        %v771 = vadd.f32 %v667, %v739
        %v772 = vadd.f32 %v670, %v740
        %v773 = vadd.f32 %v675, %v741
        %v774 = vadd.f32 %v678, %v742
        %v775 = vadd.f32 %v683, %v743
        %v776 = vadd.f32 %v686, %v744
        %v777 = vadd.f32 %v691, %v745
        %v778 = vadd.f32 %v694, %v746
        %v779 = vadd.f32 %v699, %v747
        %v780 = vadd.f32 %v702, %v748
        %v781 = vadd.f32 %v707, %v749
        %v782 = vadd.f32 %v710, %v750
        %v783 = vadd.f32 %v715, %v751
        %v784 = vadd.f32 %v718, %v752
        %785 = vadd.xlane.f32.xlu0 %v753
        %v786 = vpop.xlane.xlu0 %785
        %787 = vadd.xlane.f32.xlu0 %v754
        %v788 = vpop.xlane.xlu0 %787
        %789 = vadd.xlane.f32.xlu0 %v755
        %v790 = vpop.xlane.xlu0 %789
        %791 = vadd.xlane.f32.xlu0 %v756
        %v792 = vpop.xlane.xlu0 %791
        %793 = vadd.xlane.f32.xlu0 %v757
        %v794 = vpop.xlane.xlu0 %793
        %795 = vadd.xlane.f32.xlu0 %v758
        %v796 = vpop.xlane.xlu0 %795
        %797 = vadd.xlane.f32.xlu0 %v759
        %v798 = vpop.xlane.xlu0 %797
        %799 = vadd.xlane.f32.xlu0 %v760
        %v800 = vpop.xlane.xlu0 %799
        %801 = vadd.xlane.f32.xlu0 %v761
        %v802 = vpop.xlane.xlu0 %801
        %803 = vadd.xlane.f32.xlu0 %v762
        %v804 = vpop.xlane.xlu0 %803
        %805 = vadd.xlane.f32.xlu0 %v763
        %v806 = vpop.xlane.xlu0 %805
        %807 = vadd.xlane.f32.xlu0 %v764
        %v808 = vpop.xlane.xlu0 %807
        %809 = vadd.xlane.f32.xlu0 %v765
        %v810 = vpop.xlane.xlu0 %809
        %811 = vadd.xlane.f32.xlu0 %v766
        %v812 = vpop.xlane.xlu0 %811
        %813 = vadd.xlane.f32.xlu0 %v767
        %v814 = vpop.xlane.xlu0 %813
        %815 = vadd.xlane.f32.xlu0 %v768
        %v816 = vpop.xlane.xlu0 %815
        %817 = vadd.xlane.f32.xlu0 %v769
        %v818 = vpop.xlane.xlu0 %817
        %819 = vadd.xlane.f32.xlu0 %v770
        %v820 = vpop.xlane.xlu0 %819
        %821 = vadd.xlane.f32.xlu0 %v771
        %v822 = vpop.xlane.xlu0 %821
        %823 = vadd.xlane.f32.xlu0 %v772
        %v824 = vpop.xlane.xlu0 %823
        %825 = vadd.xlane.f32.xlu0 %v773
        %v826 = vpop.xlane.xlu0 %825
        %827 = vadd.xlane.f32.xlu0 %v774
        %v828 = vpop.xlane.xlu0 %827
        %829 = vadd.xlane.f32.xlu0 %v775
        %v830 = vpop.xlane.xlu0 %829
        %831 = vadd.xlane.f32.xlu0 %v776
        %v832 = vpop.xlane.xlu0 %831
        %833 = vadd.xlane.f32.xlu0 %v777
        %v834 = vpop.xlane.xlu0 %833
        %835 = vadd.xlane.f32.xlu0 %v778
        %v836 = vpop.xlane.xlu0 %835
        %837 = vadd.xlane.f32.xlu0 %v779
        %v838 = vpop.xlane.xlu0 %837
        %839 = vadd.xlane.f32.xlu0 %v780
        %v840 = vpop.xlane.xlu0 %839
        %841 = vadd.xlane.f32.xlu0 %v781
        %v842 = vpop.xlane.xlu0 %841
        %843 = vadd.xlane.f32.xlu0 %v782
        %v844 = vpop.xlane.xlu0 %843
        %845 = vadd.xlane.f32.xlu0 %v783
        %v846 = vpop.xlane.xlu0 %845
        %847 = vadd.xlane.f32.xlu0 %v784
        %v848 = vpop.xlane.xlu0 %847
        %v849 = vmul.f32 %v786, 0.0078125
        %v850 = vmul.f32 %v788, 0.0078125
        %v851 = vmul.f32 %v790, 0.0078125
        %v852 = vmul.f32 %v792, 0.0078125
        %v853 = vmul.f32 %v794, 0.0078125
        %v854 = vmul.f32 %v796, 0.0078125
        %v855 = vmul.f32 %v798, 0.0078125
        %v856 = vmul.f32 %v800, 0.0078125
        %v857 = vmul.f32 %v802, 0.0078125
        %v858 = vmul.f32 %v804, 0.0078125
        %v859 = vmul.f32 %v806, 0.0078125
        %v860 = vmul.f32 %v808, 0.0078125
        %v861 = vmul.f32 %v810, 0.0078125
        %v862 = vmul.f32 %v812, 0.0078125
        %v863 = vmul.f32 %v814, 0.0078125
        %v864 = vmul.f32 %v816, 0.0078125
        %v865 = vmul.f32 %v818, 0.0078125
        %v866 = vmul.f32 %v820, 0.0078125
        %v867 = vmul.f32 %v822, 0.0078125
        %v868 = vmul.f32 %v824, 0.0078125
        %v869 = vmul.f32 %v826, 0.0078125
        %v870 = vmul.f32 %v828, 0.0078125
        %v871 = vmul.f32 %v830, 0.0078125
        %v872 = vmul.f32 %v832, 0.0078125
        %v873 = vmul.f32 %v834, 0.0078125
        %v874 = vmul.f32 %v836, 0.0078125
        %v875 = vmul.f32 %v838, 0.0078125
        %v876 = vmul.f32 %v840, 0.0078125
        %v877 = vmul.f32 %v842, 0.0078125
        %v878 = vmul.f32 %v844, 0.0078125
        %v879 = vmul.f32 %v846, 0.0078125
        %v880 = vmul.f32 %v848, 0.0078125
        %v881 = vsub.f32 %v753, %v849
        %v882 = vsub.f32 %v754, %v850
        %v883 = vsub.f32 %v755, %v851
        %v884 = vsub.f32 %v756, %v852
        %v885 = vsub.f32 %v757, %v853
        %v886 = vsub.f32 %v758, %v854
        %v887 = vsub.f32 %v759, %v855
        %v888 = vsub.f32 %v760, %v856
        %v889 = vsub.f32 %v761, %v857
        %v890 = vsub.f32 %v762, %v858
        %v891 = vsub.f32 %v763, %v859
        %v892 = vsub.f32 %v764, %v860
        %v893 = vsub.f32 %v765, %v861
        %v894 = vsub.f32 %v766, %v862
        %v895 = vsub.f32 %v767, %v863
        %v896 = vsub.f32 %v768, %v864
        %v897 = vsub.f32 %v769, %v865
        %v898 = vsub.f32 %v770, %v866
        %v899 = vsub.f32 %v771, %v867
        %v900 = vsub.f32 %v772, %v868
        %v901 = vsub.f32 %v773, %v869
        %v902 = vsub.f32 %v774, %v870
        %v903 = vsub.f32 %v775, %v871
        %v904 = vsub.f32 %v776, %v872
        %v905 = vsub.f32 %v777, %v873
        %v906 = vsub.f32 %v778, %v874
        %v907 = vsub.f32 %v779, %v875
        %v908 = vsub.f32 %v780, %v876
        %v909 = vsub.f32 %v781, %v877
        %v910 = vsub.f32 %v782, %v878
        %v911 = vsub.f32 %v783, %v879
        %v912 = vsub.f32 %v784, %v880
        %v913 = vmul.f32 %v881, %v881
        %v914 = vmul.f32 %v882, %v882
        %v915 = vmul.f32 %v883, %v883
        %v916 = vmul.f32 %v884, %v884
        %v917 = vmul.f32 %v885, %v885
        %v918 = vmul.f32 %v886, %v886
        %v919 = vmul.f32 %v887, %v887
        %v920 = vmul.f32 %v888, %v888
        %v921 = vmul.f32 %v889, %v889
        %v922 = vmul.f32 %v890, %v890
        %v923 = vmul.f32 %v891, %v891
        %v924 = vmul.f32 %v892, %v892
        %v925 = vmul.f32 %v893, %v893
        %v926 = vmul.f32 %v894, %v894
        %v927 = vmul.f32 %v895, %v895
        %v928 = vmul.f32 %v896, %v896
        %v929 = vmul.f32 %v897, %v897
        %v930 = vmul.f32 %v898, %v898
        %v931 = vmul.f32 %v899, %v899
        %v932 = vmul.f32 %v900, %v900
        %v933 = vmul.f32 %v901, %v901
        %v934 = vmul.f32 %v902, %v902
        %v935 = vmul.f32 %v903, %v903
        %v936 = vmul.f32 %v904, %v904
        %v937 = vmul.f32 %v905, %v905
        %v938 = vmul.f32 %v906, %v906
        %v939 = vmul.f32 %v907, %v907
        %v940 = vmul.f32 %v908, %v908
        %v941 = vmul.f32 %v909, %v909
        %v942 = vmul.f32 %v910, %v910
        %v943 = vmul.f32 %v911, %v911
        %v944 = vmul.f32 %v912, %v912
        %945 = vadd.xlane.f32.xlu0 %v913
        %v946 = vpop.xlane.xlu0 %945
        %947 = vadd.xlane.f32.xlu0 %v914
        %v948 = vpop.xlane.xlu0 %947
        %949 = vadd.xlane.f32.xlu0 %v915
        %v950 = vpop.xlane.xlu0 %949
        %951 = vadd.xlane.f32.xlu0 %v916
        %v952 = vpop.xlane.xlu0 %951
        %953 = vadd.xlane.f32.xlu0 %v917
        %v954 = vpop.xlane.xlu0 %953
        %955 = vadd.xlane.f32.xlu0 %v918
        %v956 = vpop.xlane.xlu0 %955
        %957 = vadd.xlane.f32.xlu0 %v919
        %v958 = vpop.xlane.xlu0 %957
        %959 = vadd.xlane.f32.xlu0 %v920
        %v960 = vpop.xlane.xlu0 %959
        %961 = vadd.xlane.f32.xlu0 %v921
        %v962 = vpop.xlane.xlu0 %961
        %963 = vadd.xlane.f32.xlu0 %v922
        %v964 = vpop.xlane.xlu0 %963
        %965 = vadd.xlane.f32.xlu0 %v923
        %v966 = vpop.xlane.xlu0 %965
        %967 = vadd.xlane.f32.xlu0 %v924
        %v968 = vpop.xlane.xlu0 %967
        %969 = vadd.xlane.f32.xlu0 %v925
        %v970 = vpop.xlane.xlu0 %969
        %971 = vadd.xlane.f32.xlu0 %v926
        %v972 = vpop.xlane.xlu0 %971
        %973 = vadd.xlane.f32.xlu0 %v927
        %v974 = vpop.xlane.xlu0 %973
        %975 = vadd.xlane.f32.xlu0 %v928
        %v976 = vpop.xlane.xlu0 %975
        %977 = vadd.xlane.f32.xlu0 %v929
        %v978 = vpop.xlane.xlu0 %977
        %979 = vadd.xlane.f32.xlu0 %v930
        %v980 = vpop.xlane.xlu0 %979
        %981 = vadd.xlane.f32.xlu0 %v931
        %v982 = vpop.xlane.xlu0 %981
        %983 = vadd.xlane.f32.xlu0 %v932
        %v984 = vpop.xlane.xlu0 %983
        %985 = vadd.xlane.f32.xlu0 %v933
        %v986 = vpop.xlane.xlu0 %985
        %987 = vadd.xlane.f32.xlu0 %v934
        %v988 = vpop.xlane.xlu0 %987
        %989 = vadd.xlane.f32.xlu0 %v935
        %v990 = vpop.xlane.xlu0 %989
        %991 = vadd.xlane.f32.xlu0 %v936
        %v992 = vpop.xlane.xlu0 %991
        %993 = vadd.xlane.f32.xlu0 %v937
        %v994 = vpop.xlane.xlu0 %993
        %995 = vadd.xlane.f32.xlu0 %v938
        %v996 = vpop.xlane.xlu0 %995
        %997 = vadd.xlane.f32.xlu0 %v939
        %v998 = vpop.xlane.xlu0 %997
        %999 = vadd.xlane.f32.xlu0 %v940
        %v1000 = vpop.xlane.xlu0 %999
        %1001 = vadd.xlane.f32.xlu0 %v941
        %v1002 = vpop.xlane.xlu0 %1001
        %1003 = vadd.xlane.f32.xlu0 %v942
        %v1004 = vpop.xlane.xlu0 %1003
        %1005 = vadd.xlane.f32.xlu0 %v943
        %v1006 = vpop.xlane.xlu0 %1005
        %1007 = vadd.xlane.f32.xlu0 %v944
        %v1008 = vpop.xlane.xlu0 %1007
        %v1009 = vmul.f32 %v946, 0.0078125
        %v1010 = vmul.f32 %v948, 0.0078125
        %v1011 = vmul.f32 %v950, 0.0078125
        %v1012 = vmul.f32 %v952, 0.0078125
        %v1013 = vmul.f32 %v954, 0.0078125
        %v1014 = vmul.f32 %v956, 0.0078125
        %v1015 = vmul.f32 %v958, 0.0078125
        %v1016 = vmul.f32 %v960, 0.0078125
        %v1017 = vmul.f32 %v962, 0.0078125
        %v1018 = vmul.f32 %v964, 0.0078125
        %v1019 = vmul.f32 %v966, 0.0078125
        %v1020 = vmul.f32 %v968, 0.0078125
        %v1021 = vmul.f32 %v970, 0.0078125
        %v1022 = vmul.f32 %v972, 0.0078125
        %v1023 = vmul.f32 %v974, 0.0078125
        %v1024 = vmul.f32 %v976, 0.0078125
        %v1025 = vmul.f32 %v978, 0.0078125
        %v1026 = vmul.f32 %v980, 0.0078125
        %v1027 = vmul.f32 %v982, 0.0078125
        %v1028 = vmul.f32 %v984, 0.0078125
        %v1029 = vmul.f32 %v986, 0.0078125
        %v1030 = vmul.f32 %v988, 0.0078125
        %v1031 = vmul.f32 %v990, 0.0078125
        %v1032 = vmul.f32 %v992, 0.0078125
        %v1033 = vmul.f32 %v994, 0.0078125
        %v1034 = vmul.f32 %v996, 0.0078125
        %v1035 = vmul.f32 %v998, 0.0078125
        %v1036 = vmul.f32 %v1000, 0.0078125
        %v1037 = vmul.f32 %v1002, 0.0078125
        %v1038 = vmul.f32 %v1004, 0.0078125
        %v1039 = vmul.f32 %v1006, 0.0078125
        %v1040 = vmul.f32 %v1008, 0.0078125
        %v1041 = vadd.f32 %v1009, 1e-12
        %v1042 = vadd.f32 %v1010, 1e-12
        %v1043 = vadd.f32 %v1011, 1e-12
        %v1044 = vadd.f32 %v1012, 1e-12
        %v1045 = vadd.f32 %v1013, 1e-12
        %v1046 = vadd.f32 %v1014, 1e-12
        %v1047 = vadd.f32 %v1015, 1e-12
        %v1048 = vadd.f32 %v1016, 1e-12
        %v1049 = vadd.f32 %v1017, 1e-12
        %v1050 = vadd.f32 %v1018, 1e-12
        %v1051 = vadd.f32 %v1019, 1e-12
        %v1052 = vadd.f32 %v1020, 1e-12
        %v1053 = vadd.f32 %v1021, 1e-12
        %v1054 = vadd.f32 %v1022, 1e-12
        %v1055 = vadd.f32 %v1023, 1e-12
        %v1056 = vadd.f32 %v1024, 1e-12
        %v1057 = vadd.f32 %v1025, 1e-12
        %v1058 = vadd.f32 %v1026, 1e-12
        %v1059 = vadd.f32 %v1027, 1e-12
        %v1060 = vadd.f32 %v1028, 1e-12
        %v1061 = vadd.f32 %v1029, 1e-12
        %v1062 = vadd.f32 %v1030, 1e-12
        %v1063 = vadd.f32 %v1031, 1e-12
        %v1064 = vadd.f32 %v1032, 1e-12
        %v1065 = vadd.f32 %v1033, 1e-12
        %v1066 = vadd.f32 %v1034, 1e-12
        %v1067 = vadd.f32 %v1035, 1e-12
        %v1068 = vadd.f32 %v1036, 1e-12
        %v1069 = vadd.f32 %v1037, 1e-12
        %v1070 = vadd.f32 %v1038, 1e-12
        %v1071 = vadd.f32 %v1039, 1e-12
        %v1072 = vadd.f32 %v1040, 1e-12
        %v1073 = vrsqrt.pop %v1041
        %v1074 = vrsqrt.pop %v1042
        %v1075 = vrsqrt.pop %v1043
        %v1076 = vrsqrt.pop %v1044
        %v1077 = vrsqrt.pop %v1045
        %v1078 = vrsqrt.pop %v1046
        %v1079 = vrsqrt.pop %v1047
        %v1080 = vrsqrt.pop %v1048
        %v1081 = vrsqrt.pop %v1049
        %v1082 = vrsqrt.pop %v1050
        %v1083 = vrsqrt.pop %v1051
        %v1084 = vrsqrt.pop %v1052
        %v1085 = vrsqrt.pop %v1053
        %v1086 = vrsqrt.pop %v1054
        %v1087 = vrsqrt.pop %v1055
        %v1088 = vrsqrt.pop %v1056
        %v1089 = vrsqrt.pop %v1057
        %v1090 = vrsqrt.pop %v1058
        %v1091 = vrsqrt.pop %v1059
        %v1092 = vrsqrt.pop %v1060
        %v1093 = vrsqrt.pop %v1061
        %v1094 = vrsqrt.pop %v1062
        %v1095 = vrsqrt.pop %v1063
        %v1096 = vrsqrt.pop %v1064
        %v1097 = vrsqrt.pop %v1065
        %v1098 = vrsqrt.pop %v1066
        %v1099 = vrsqrt.pop %v1067
        %v1100 = vrsqrt.pop %v1068
        %v1101 = vrsqrt.pop %v1069
        %v1102 = vrsqrt.pop %v1070
        %v1103 = vrsqrt.pop %v1071
        %v1104 = vrsqrt.pop %v1072
        %v1105 = vmul.f32 %v881, %v1073
        %v1106 = vmul.f32 %v882, %v1074
        %v1107 = vmul.f32 %v883, %v1075
        %v1108 = vmul.f32 %v884, %v1076
        %v1109 = vmul.f32 %v885, %v1077
        %v1110 = vmul.f32 %v886, %v1078
        %v1111 = vmul.f32 %v887, %v1079
        %v1112 = vmul.f32 %v888, %v1080
        %v1113 = vmul.f32 %v889, %v1081
        %v1114 = vmul.f32 %v890, %v1082
        %v1115 = vmul.f32 %v891, %v1083
        %v1116 = vmul.f32 %v892, %v1084
        %v1117 = vmul.f32 %v893, %v1085
        %v1118 = vmul.f32 %v894, %v1086
        %v1119 = vmul.f32 %v895, %v1087
        %v1120 = vmul.f32 %v896, %v1088
        %v1121 = vmul.f32 %v897, %v1089
        %v1122 = vmul.f32 %v898, %v1090
        %v1123 = vmul.f32 %v899, %v1091
        %v1124 = vmul.f32 %v900, %v1092
        %v1125 = vmul.f32 %v901, %v1093
        %v1126 = vmul.f32 %v902, %v1094
        %v1127 = vmul.f32 %v903, %v1095
        %v1128 = vmul.f32 %v904, %v1096
        %v1129 = vmul.f32 %v905, %v1097
        %v1130 = vmul.f32 %v906, %v1098
        %v1131 = vmul.f32 %v907, %v1099
        %v1132 = vmul.f32 %v908, %v1100
        %v1133 = vmul.f32 %v909, %v1101
        %v1134 = vmul.f32 %v910, %v1102
        %v1135 = vmul.f32 %v911, %v1103
        %v1136 = vmul.f32 %v912, %v1104
        %v1137 = vld [vmem:[%s4] sm:$0x1]
        %v1139 = vlaneseq
        %v1140 = vshrl.u32 %v1139, 7
        %v1141 = vsub.s32 0, %v1140
        %v1142 = vrot.slane %v1137, %v1141
        %v1144 = vmul.f32 %v1105, %v1142
        %v1145 = vmul.f32 %v1106, %v1142
        %v1146 = vmul.f32 %v1107, %v1142
        %v1147 = vmul.f32 %v1108, %v1142
        %v1148 = vmul.f32 %v1109, %v1142
        %v1149 = vmul.f32 %v1110, %v1142
        %v1150 = vmul.f32 %v1111, %v1142
        %v1151 = vmul.f32 %v1112, %v1142
        %v1152 = vmul.f32 %v1113, %v1142
        %v1153 = vmul.f32 %v1114, %v1142
        %v1154 = vmul.f32 %v1115, %v1142
        %v1155 = vmul.f32 %v1116, %v1142
        %v1156 = vmul.f32 %v1117, %v1142
        %v1157 = vmul.f32 %v1118, %v1142
        %v1158 = vmul.f32 %v1119, %v1142
        %v1159 = vmul.f32 %v1120, %v1142
        %v1160 = vmul.f32 %v1121, %v1142
        %v1161 = vmul.f32 %v1122, %v1142
        %v1162 = vmul.f32 %v1123, %v1142
        %v1163 = vmul.f32 %v1124, %v1142
        %v1164 = vmul.f32 %v1125, %v1142
        %v1165 = vmul.f32 %v1126, %v1142
        %v1166 = vmul.f32 %v1127, %v1142
        %v1167 = vmul.f32 %v1128, %v1142
        %v1168 = vmul.f32 %v1129, %v1142
        %v1169 = vmul.f32 %v1130, %v1142
        %v1170 = vmul.f32 %v1131, %v1142
        %v1171 = vmul.f32 %v1132, %v1142
        %v1172 = vmul.f32 %v1133, %v1142
        %v1173 = vmul.f32 %v1134, %v1142
        %v1174 = vmul.f32 %v1135, %v1142
        %v1175 = vmul.f32 %v1136, %v1142
        %v1176 = vld [vmem:[%s5] sm:$0x1]
        %v1178 = vlaneseq
        %v1179 = vshrl.u32 %v1178, 7
        %v1180 = vsub.s32 0, %v1179
        %v1181 = vrot.slane %v1176, %v1180
        %v1183 = vadd.f32 %v1144, %v1181
        %v1184 = vadd.f32 %v1145, %v1181
        %v1185 = vadd.f32 %v1146, %v1181
        %v1186 = vadd.f32 %v1147, %v1181
        %v1187 = vadd.f32 %v1148, %v1181
        %v1188 = vadd.f32 %v1149, %v1181
        %v1189 = vadd.f32 %v1150, %v1181
        %v1190 = vadd.f32 %v1151, %v1181
        %v1191 = vadd.f32 %v1152, %v1181
        %v1192 = vadd.f32 %v1153, %v1181
        %v1193 = vadd.f32 %v1154, %v1181
        %v1194 = vadd.f32 %v1155, %v1181
        %v1195 = vadd.f32 %v1156, %v1181
        %v1196 = vadd.f32 %v1157, %v1181
        %v1197 = vadd.f32 %v1158, %v1181
        %v1198 = vadd.f32 %v1159, %v1181
        %v1199 = vadd.f32 %v1160, %v1181
        %v1200 = vadd.f32 %v1161, %v1181
        %v1201 = vadd.f32 %v1162, %v1181
        %v1202 = vadd.f32 %v1163, %v1181
        %v1203 = vadd.f32 %v1164, %v1181
        %v1204 = vadd.f32 %v1165, %v1181
        %v1205 = vadd.f32 %v1166, %v1181
        %v1206 = vadd.f32 %v1167, %v1181
        %v1207 = vadd.f32 %v1168, %v1181
        %v1208 = vadd.f32 %v1169, %v1181
        %v1209 = vadd.f32 %v1170, %v1181
        %v1210 = vadd.f32 %v1171, %v1181
        %v1211 = vadd.f32 %v1172, %v1181
        %v1212 = vadd.f32 %v1173, %v1181
        %v1213 = vadd.f32 %v1174, %v1181
        %v1214 = vadd.f32 %v1175, %v1181
        %1215 = vst [vmem:[%s324] sm:$0xff] %v1183
        %1216 = vst [vmem:[%s324 + $0x8] sm:$0xff] %v1184
        %1217 = vst [vmem:[%s324 + $0x10] sm:$0xff] %v1185
        %1218 = vst [vmem:[%s324 + $0x18] sm:$0xff] %v1186
        %1219 = vst [vmem:[%s324 + $0x20] sm:$0xff] %v1187
        %1220 = vst [vmem:[%s324 + $0x28] sm:$0xff] %v1188
        %1221 = vst [vmem:[%s324 + $0x30] sm:$0xff] %v1189
        %1222 = vst [vmem:[%s324 + $0x38] sm:$0xff] %v1190
        %1223 = vst [vmem:[%s324 + $0x40] sm:$0xff] %v1191
        %1224 = vst [vmem:[%s324 + $0x48] sm:$0xff] %v1192
        %1225 = vst [vmem:[%s324 + $0x50] sm:$0xff] %v1193
        %1226 = vst [vmem:[%s324 + $0x58] sm:$0xff] %v1194
        %1227 = vst [vmem:[%s324 + $0x60] sm:$0xff] %v1195
        %1228 = vst [vmem:[%s324 + $0x68] sm:$0xff] %v1196
        %1229 = vst [vmem:[%s324 + $0x70] sm:$0xff] %v1197
        %1230 = vst [vmem:[%s324 + $0x78] sm:$0xff] %v1198
        %1231 = vst [vmem:[%s324 + $0x80] sm:$0xff] %v1199
        %1232 = vst [vmem:[%s324 + $0x88] sm:$0xff] %v1200
        %1233 = vst [vmem:[%s324 + $0x90] sm:$0xff] %v1201
        %1234 = vst [vmem:[%s324 + $0x98] sm:$0xff] %v1202
        %1235 = vst [vmem:[%s324 + $0xa0] sm:$0xff] %v1203
        %1236 = vst [vmem:[%s324 + $0xa8] sm:$0xff] %v1204
        %1237 = vst [vmem:[%s324 + $0xb0] sm:$0xff] %v1205
        %1238 = vst [vmem:[%s324 + $0xb8] sm:$0xff] %v1206
        %1239 = vst [vmem:[%s324 + $0xc0] sm:$0xff] %v1207
        %1240 = vst [vmem:[%s324 + $0xc8] sm:$0xff] %v1208
        %1241 = vst [vmem:[%s324 + $0xd0] sm:$0xff] %v1209
        %1242 = vst [vmem:[%s324 + $0xd8] sm:$0xff] %v1210
        %1243 = vst [vmem:[%s324 + $0xe0] sm:$0xff] %v1211
        %1244 = vst [vmem:[%s324 + $0xe8] sm:$0xff] %v1212
        %1245 = vst [vmem:[%s324 + $0xf0] sm:$0xff] %v1213
        %1246 = vst [vmem:[%s324 + $0xf8] sm:$0xff] %v1214
        %s1247 = sand.u32 %s170, 1
        %s1248 = scalar_lea.sflag [#allocation4], %s1247
        %s1249 = sand.u32 %s170, 1
        %s1250 = smul.addr %s1249, 256
        %s1251 = scalar_lea.vmem [#allocation8], %s1250
        // Predicated region
        $region57: #{tpu_custom_call.1} parent=43 // pred_check
          %p1252 = pneg %p180
        $region58: #{tpu_custom_call.1} parent=43 // pred_check_branch
          %1254 = sbr.rel (%p1252) target = $region60
        $region59: #{tpu_custom_call.1} parent=43 // pred_region
          %s1255 = smul.u32 32, %s26
          %s1257 = ssub.s32 4096, 4096
          %1258 = vsyncadd %s1248, %s1257
          %s1259 = smul.addr %s1255, 128
          %s1260 = scalar_lea.hbm %s6, %s1259
          %s1261 = sshll.u32 %s1251, 4
          %s1262 = int_to_ptr.vmem [resolvable:$true] %s1261
          %1267 = dma.vmem_to_hbm [thread:$0]  %s1262, 4096, %s1260, %s1248, 128, 128, 8
        $region60: #{tpu_custom_call.1} parent=43 // pred_fallthru
          _
      $region44: #{tpu_custom_call.1} parent=5 // pred_fallthru
        _
      %p1268 = scmp.le.s32.totalorder 2, %s21
      // Predicated region
      $region61: #{tpu_custom_call.1} parent=5 // pred_check
        %p1269 = pneg %p1268
      $region62: #{tpu_custom_call.1} parent=5 // pred_check_branch
        %1271 = sbr.rel (%p1269) target = $region64
      $region63: #{tpu_custom_call.1} parent=5 // pred_region
        %s1272 = ssub.s32 %s21, 2
        // Predicated region
        $region65: #{tpu_custom_call.1} parent=63 // pred_check
          %p1273 = pneg %p186
        $region66: #{tpu_custom_call.1} parent=63 // pred_check_branch
          %1275 = sbr.rel (%p1273) target = $region68
        $region67: #{tpu_custom_call.1} parent=63 // pred_region
          %s1276 = sand.u32 %s171, 1
          %s1277 = scalar_lea.sflag [#allocation4], %s1276
          %s1278 = sand.u32 %s171, 1
          %s1279 = smul.addr %s1278, 256
          %s1280 = scalar_lea.vmem [#allocation8], %s1279
          %1281 = dma.done %s1277, 4096
        $region68: #{tpu_custom_call.1} parent=63 // pred_fallthru
          _
      $region64: #{tpu_custom_call.1} parent=5 // pred_fallthru
        _
    $region6: #{tpu_custom_call.1} parent=1 // loop_footer
      %s25 = sadd.s32 1, %s21
    $region7: #{tpu_custom_call.1} parent=1 // loop_footer_branch
      %20 = sbr.rel target = $region3
    $region8: #{tpu_custom_call.1} parent=1 // loop_exit
      _
    %1282 = vsyncpa [#allocation3], 1
    %s1283 = scalar_lea.sflag [#allocation3], 1
    %1284 = vsyncpa %s1283, 1
    %1285 = vsyncpa [#allocation6], 1
    %s1286 = scalar_lea.sflag [#allocation6], 1
    %1287 = vsyncpa %s1286, 1
    %1288 = vsyncpa [#allocation4], 1
    %s1289 = scalar_lea.sflag [#allocation4], 1
    %1290 = vsyncpa %s1289, 1

</llo_original>
